<compile_context>
chip_gen: v5e
topology: v5e:2x2
jax: 0.10.0
libtpu: 0.0.40
codegen_flags: <defaults>
</compile_context>

<pallas_src>
import functools

import jax
import jax.numpy as jnp
from jax.experimental import pallas as pl
from jax.experimental.pallas import tpu as pltpu

EPS = 1e-8


def _round_up(x, m):
    return ((x + m - 1) // m) * m


def _bert_head_kernel(x_ref, w_ref, b_ref, out_ref, *, apply_norm):
    # x_ref  : (TM, H)      row-tile of the flattened (B*L, 768) BERT output
    # w_ref  : (H, E_pad)   linear weight in (in, out) layout, grid-resident
    # b_ref  : (1, E_pad)   linear bias (f32), grid-resident
    # out_ref: (TM, E_pad)  lane-dense output tile
    y = jnp.dot(x_ref[...], w_ref[...], preferred_element_type=jnp.float32)
    y = y + b_ref[...]
    if apply_norm:
        # VSE-style l2norm: x / (sqrt(sum(x^2, -1)) + eps).  Padded output
        # columns are exactly zero (zero weight & bias), so they do not
        # perturb the per-row norm.  Divide goes to the EUP slot.
        norm = jnp.sqrt(jnp.sum(y * y, axis=-1, keepdims=True)) + EPS
        y = y * pl.reciprocal(norm, approx=True)
    out_ref[...] = y.astype(out_ref.dtype)


def prepare_bert_head_params(weight, bias, *, dtype=None):
    """One-time parameter prep (hoisted out of the per-forward path).

    weight: (E, 768) torch nn.Linear layout (out, in)
    bias  : (E,)
    dtype : optional compute dtype for the weight (e.g. jnp.bfloat16 when the
            BERT backbone emits bf16); bias stays f32 (added post-accumulation).
    Returns (w_t, b2d) with w_t: (768, E_pad), b2d: (1, E_pad) f32.
    """
    E, H = weight.shape
    # v6e/v7x MXU is 2x256^2: use 256-wide output chunks when they fit; the
    # 128-lane minimum otherwise (native for v5e's 4x128^2).
    pad_unit = 256 if E >= 256 else 128
    e_pad = _round_up(E, pad_unit)

    w_t = jnp.transpose(weight)                               # (H, E)
    if dtype is not None:
        w_t = w_t.astype(dtype)
    if e_pad != E:
        w_t = jnp.pad(w_t, ((0, 0), (0, e_pad - E)))
        b2d = jnp.pad(bias, (0, e_pad - E)).reshape(1, e_pad)
    else:
        b2d = bias.reshape(1, e_pad)
    return w_t, b2d.astype(jnp.float32)


def encoder_text_bert_fwd(bert_emb, w_t, b2d, *, embed_size, no_txtnorm=False,
                          block_rows=512, return_padded=False):
    """Fused Linear(768 -> embed_size) + l2norm head of EncoderTextBert.

    bert_emb: (B, L, 768)  BERT backbone hidden states (f32 or bf16)
    w_t     : (768, E_pad) prepared weight (see prepare_bert_head_params)
    b2d     : (1, E_pad)   prepared bias (f32)
    returns : (B, L, E)    (or (B, L, E_pad) if return_padded=True, which
                            skips the post-kernel slice pass entirely)
    """
    B, L, H = bert_emb.shape
    e_pad = w_t.shape[1]

    # Compute dtype follows the prepared weight (bf16 backbone -> bf16 stream).
    if bert_emb.dtype != w_t.dtype:
        bert_emb = bert_emb.astype(w_t.dtype)
    out_dtype = bert_emb.dtype

    M = B * L
    x2d = bert_emb.reshape(M, H)

    # Row-tile size: as big as VMEM comfortably allows (mem-bound kernel), but
    # keep at least 2 grid steps on large problems so a v7x chip can shard the
    # row axis across both TensorCores.
    block_rows = max(8, (block_rows // 8) * 8)
    tm = min(block_rows, M)
    if M >= 256 and pl.cdiv(M, tm) < 2:
        tm = _round_up(pl.cdiv(M, 2), 8)
    grid = (pl.cdiv(M, tm),)

    # Single-buffer the grid-resident weight/bias when they are large -- their
    # block index is constant so a second buffer is pure VMEM waste (matters
    # most on v7x's 64 MiB VMEM).
    w_bytes = H * e_pad * jnp.dtype(w_t.dtype).itemsize
    resident_kw = {}
    if w_bytes > 4 * 1024 * 1024:
        resident_kw = dict(pipeline_mode=pl.Buffered(1))

    # Explicit VMEM budget (double-buffered x/out tiles + resident params),
    # so large tiles don't trip v5e's 16 MiB default scoped limit.
    x_it = jnp.dtype(x2d.dtype).itemsize
    o_it = jnp.dtype(out_dtype).itemsize
    w_bufs = 1 if resident_kw else 2
    need = (2 * tm * H * x_it + w_bufs * w_bytes + 2 * e_pad * 4
            + 2 * tm * e_pad * o_it)
    vmem_limit = min(max(int(need * 1.5), 32 * 1024 * 1024), 128 * 1024 * 1024)

    cost = pl.CostEstimate(
        flops=2 * M * H * e_pad,
        transcendentals=2 * M,                      # sqrt + reciprocal per row
        bytes_accessed=M * H * x_it + w_bytes + e_pad * 4 + M * e_pad * o_it)

    out = pl.pallas_call(
        functools.partial(_bert_head_kernel, apply_norm=not no_txtnorm),
        out_shape=jax.ShapeDtypeStruct((M, e_pad), out_dtype),
        grid=grid,
        in_specs=[
            pl.BlockSpec((tm, H), lambda i: (i, 0)),                  # x tile
            pl.BlockSpec((H, e_pad), lambda i: (0, 0), **resident_kw),  # weight
            pl.BlockSpec((1, e_pad), lambda i: (0, 0), **resident_kw),  # bias
        ],
        out_specs=pl.BlockSpec((tm, e_pad), lambda i: (i, 0)),
        compiler_params=pltpu.CompilerParams(
            dimension_semantics=("parallel",),
            vmem_limit_bytes=vmem_limit),
        cost_estimate=cost,
    )(x2d, w_t, b2d)

    if return_padded:
        return out.reshape(B, L, e_pad)
    if e_pad != embed_size:
        out = out[:, :embed_size]
    return out.reshape(B, L, embed_size)


def encoder_text_bert(bert_emb, weight, bias, *, no_txtnorm=False,
                      block_rows=512, return_padded=False):
    """Convenience wrapper (prep + forward). Prefer hoisting the prep."""
    w_t, b2d = prepare_bert_head_params(weight, bias, dtype=bert_emb.dtype)
    return encoder_text_bert_fwd(bert_emb, w_t, b2d, embed_size=weight.shape[0],
                                 no_txtnorm=no_txtnorm, block_rows=block_rows,
                                 return_padded=return_padded)


def encoder_text_bert_ref(bert_emb, weight, bias, *, no_txtnorm=False):
    """Plain-JAX reference (same math as the PyTorch head)."""
    y = jnp.einsum('blh,eh->ble', bert_emb.astype(jnp.float32),
                   weight.astype(jnp.float32)) + bias.astype(jnp.float32)
    if not no_txtnorm:
        norm = jnp.sqrt(jnp.sum(y * y, axis=-1, keepdims=True)) + EPS
        y = y / norm
    return y


if __name__ == "__main__":
    key = jax.random.PRNGKey(0)
    B, L, H, E = 2, 8, 768, 32        # batch, seq, BERT hidden, embed_size
    k1, k2, k3, k4 = jax.random.split(key, 4)

    # Inputs of the original forward (token ids, lengths); the attention mask
    # and lengths only feed the BERT backbone, which is out of kernel scope.
    token_ids = jax.random.randint(k1, (B, L), 0, 1000, dtype=jnp.int32)
    lengths = jnp.array([8, 5], dtype=jnp.int32)
    _bert_attention_mask = (token_ids != 0).astype(jnp.float32)

    # Stand-in for the BERT backbone output (see TODO above).
    bert_emb = jax.random.normal(k2, (B, L, H), dtype=jnp.float32)
    weight = jax.random.normal(k3, (E, H), dtype=jnp.float32) * 0.02
    bias = jax.random.normal(k4, (E,), dtype=jnp.float32) * 0.02

    # --- f32 path (one-time param prep hoisted out of the forward) ---------
    w_t, b2d = prepare_bert_head_params(weight, bias)
    cap_emb = encoder_text_bert_fwd(bert_emb, w_t, b2d, embed_size=E)
    cap_emb = jax.block_until_ready(cap_emb)

    ref = encoder_text_bert_ref(bert_emb, weight, bias)
    assert cap_emb.shape == (B, L, E)
    assert jnp.allclose(cap_emb, ref, atol=2e-3, rtol=2e-3)

    # --- bf16 operand path (backbone already emitting bf16) ----------------
    w_t16, b2d16 = prepare_bert_head_params(weight, bias, dtype=jnp.bfloat16)
    cap16 = encoder_text_bert_fwd(bert_emb.astype(jnp.bfloat16), w_t16, b2d16,
                                  embed_size=E)
    cap16 = jax.block_until_ready(cap16)
    ref16 = encoder_text_bert_ref(
        bert_emb.astype(jnp.bfloat16).astype(jnp.float32),
        weight.astype(jnp.bfloat16).astype(jnp.float32), bias)
    assert cap16.shape == (B, L, E)
    assert jnp.allclose(cap16.astype(jnp.float32), ref16, atol=5e-2, rtol=5e-2)

    print("KERNEL_OK")
</pallas_src>

<mosaic_0001>
module attributes {stable_mosaic.version = 11 : i64} {
  func.func @_bert_head_kernel(%arg0: i32, %arg1: memref<16x768xf32, #tpu.memory_space<vmem>>, %arg2: memref<768x128xf32, #tpu.memory_space<vmem>>, %arg3: memref<1x128xf32, #tpu.memory_space<vmem>>, %arg4: memref<16x128xf32, #tpu.memory_space<vmem>>) attributes {dimension_semantics = [#tpu.dimension_semantics<parallel>], iteration_bounds = array<i64: 1>, scalar_prefetch = 0 : i64, scratch_operands = 0 : i64, tpu.core_type = #tpu.core_type<tc>, window_params = [{transform_indices = @transform_0, window_bounds = array<i64: 16, 768>}, {pipeline_mode = #tpu.pipeline_mode<synchronous>, transform_indices = @transform_1, window_bounds = array<i64: 768, 128>}, {pipeline_mode = #tpu.pipeline_mode<synchronous>, transform_indices = @transform_2, window_bounds = array<i64: 1, 128>}, {transform_indices = @transform_3, window_bounds = array<i64: 16, 128>}]} {
    %c0 = arith.constant 0 : index
    %c0_0 = arith.constant 0 : index
    %0 = vector.load %arg1[%c0, %c0_0] : memref<16x768xf32, #tpu.memory_space<vmem>>, vector<16x768xf32>
    %c0_1 = arith.constant 0 : index
    %c0_2 = arith.constant 0 : index
    %1 = vector.load %arg2[%c0_1, %c0_2] : memref<768x128xf32, #tpu.memory_space<vmem>>, vector<768x128xf32>
    %cst = arith.constant dense<0.000000e+00> : vector<16x128xf32>
    %2 = tpu.matmul %0, %1, %cst {dimension_numbers = #tpu.dot_dimension_numbers<[1], [0], [0], [1], [0, 0, 1, 1], [], []>} : vector<16x768xf32>, vector<768x128xf32>, vector<16x128xf32> -> vector<16x128xf32>
    %c0_3 = arith.constant 0 : index
    %c0_4 = arith.constant 0 : index
    %3 = vector.load %arg3[%c0_3, %c0_4] : memref<1x128xf32, #tpu.memory_space<vmem>>, vector<1x128xf32>
    %4 = vector.broadcast %3 : vector<1x128xf32> to vector<16x128xf32>
    %5 = arith.addf %2, %4 : vector<16x128xf32>
    %6 = arith.mulf %5, %5 : vector<16x128xf32>
    %cst_5 = arith.constant dense<0.000000e+00> : vector<16xf32>
    %7 = vector.multi_reduction <add>, %6, %cst_5 [1] : vector<16x128xf32> to vector<16xf32>
    %8 = vector.shape_cast %7 : vector<16xf32> to vector<16x1xf32>
    %9 = math.sqrt %8 : vector<16x1xf32>
    %cst_6 = arith.constant 9.99999993E-9 : f32
    %10 = vector.broadcast %cst_6 : f32 to vector<16x1xf32>
    %11 = arith.addf %9, %10 : vector<16x1xf32>
    %12 = tpu.reciprocal %11 {approx = true} : vector<16x1xf32> -> vector<16x1xf32>
    %13 = vector.broadcast %12 : vector<16x1xf32> to vector<16x128xf32>
    %14 = arith.mulf %5, %13 : vector<16x128xf32>
    %c0_7 = arith.constant 0 : index
    %c0_8 = arith.constant 0 : index
    %15 = vector.load %arg4[%c0_7, %c0_8] : memref<16x128xf32, #tpu.memory_space<vmem>>, vector<16x128xf32>
    tpu.vector_store %arg4[%c0_7, %c0_8], %14 {strides = array<i32>} : memref<16x128xf32, #tpu.memory_space<vmem>>, vector<16x128xf32>,
    return
  }
  func.func @transform_0(%arg0: i32) -> (i32, i32) {
    %c0_i32 = arith.constant 0 : i32
    %c0_i32_0 = arith.constant 0 : i32
    return %arg0, %c0_i32 : i32, i32
  }
  func.func @transform_1(%arg0: i32) -> (i32, i32) {
    %c0_i32 = arith.constant 0 : i32
    %c0_i32_0 = arith.constant 0 : i32
    %c0_i32_1 = arith.constant 0 : i32
    return %c0_i32, %c0_i32_0 : i32, i32
  }
  func.func @transform_2(%arg0: i32) -> (i32, i32) {
    %c0_i32 = arith.constant 0 : i32
    %c0_i32_0 = arith.constant 0 : i32
    %c0_i32_1 = arith.constant 0 : i32
    return %c0_i32, %c0_i32_0 : i32, i32
  }
  func.func @transform_3(%arg0: i32) -> (i32, i32) {
    %c0_i32 = arith.constant 0 : i32
    %c0_i32_0 = arith.constant 0 : i32
    return %arg0, %c0_i32 : i32, i32
  }
}

</mosaic_0001>

<llo_original>
// kernel: tpu_custom_call.1
$region0: #{tpu_custom_call.1}
  #allocation0 [shape = 'u32[]', space=smem, size = 0x4, offset = 0x4, fixed_abs, tag = 'smem constant byte address 0x4 - core index']
  #allocation1 [shape = 'u32[72,128]{1,0:T(1,128)}', space=vmem, size = 0x9000, scoped, tag = 'internal scratch']
  %s0 = inlined_call_operand.hbm [shape: f32[16,768], index: 0, kind: input, shape index: {}]
  %s1 = inlined_call_operand.hbm [shape: f32[768,128], index: 1, kind: input, shape index: {}]
  %s2 = inlined_call_operand.vmem [shape: f32[1,128], index: 2, kind: input, shape index: {}]
  %s3 = inlined_call_operand.hbm [shape: f32[16,128], index: 3, kind: output, shape index: {}]
  %s4 = sld [smem:[#allocation0]]
  $region30: #{tpu_custom_call.1} parent=0
    _
  %s6 = ssub.s32 1, %s4
  %s7 = scalar_select 0, %s6, %s4
  $region1: #{tpu_custom_call.1} parent=0
    #allocation2 [shape = 'u8[49152]{0}', space=vmem, size = 0xc000, scoped, tag = 'input window, operand 0, single buffered']
    #allocation3 [shape = 's32[1]{0}', space=sflag, size = 0x4, scoped, tag = 'scoped memory for tpu_custom_call.1']
    #allocation4 [shape = 's32[1]{0}', space=sflag, size = 0x4, scoped, tag = 'scoped memory for tpu_custom_call.1']
    #allocation5 [shape = 'u8[393216]{0}', space=vmem, size = 0x60000, scoped, tag = 'input window, operand 1, single buffered']
    #allocation6 [shape = 's32[1]{0}', space=sflag, size = 0x4, scoped, tag = 'scoped memory for tpu_custom_call.1']
    #allocation7 [shape = 'u8[8192]{0}', space=vmem, size = 0x2000, scoped, tag = 'output window, operand 0, single buffered']
    %8 = vsyncpa [#allocation3], 0
    %9 = vsyncpa [#allocation6], 0
    %10 = vsyncpa [#allocation4], 0
    // Predicated region
    $region2: #{tpu_custom_call.1} parent=1 // pred_check
      _
    $region3: #{tpu_custom_call.1} parent=1 // pred_check_branch
      %12 = sbr.rel (0) target = $region5
    $region4: #{tpu_custom_call.1} parent=1 // pred_region
      %14 = vsyncadd [#allocation3], 0
      %s15 = sshll.u32 %s0, 4
      %s16 = int_to_ptr.hbm [resolvable:$true] %s15
      %s17 = sshll.u32 [#allocation2], 4
      %s18 = int_to_ptr.vmem [resolvable:$true] %s17
      %23 = dma.hbm_to_vmem [thread:$0]  %s16, 1536, %s18, [#allocation3], 768, 768, 48
    $region5: #{tpu_custom_call.1} parent=1 // pred_fallthru
      _
    // Predicated region
    $region6: #{tpu_custom_call.1} parent=1 // pred_check
      _
    $region7: #{tpu_custom_call.1} parent=1 // pred_check_branch
      %25 = sbr.rel (0) target = $region9
    $region8: #{tpu_custom_call.1} parent=1 // pred_region
      %27 = vsyncadd [#allocation6], 0
      %s28 = sshll.u32 %s1, 4
      %s29 = int_to_ptr.hbm [resolvable:$true] %s28
      %s30 = sshll.u32 [#allocation5], 4
      %s31 = int_to_ptr.vmem [resolvable:$true] %s30
      %36 = dma.hbm_to_vmem [thread:$0]  %s29, 12288, %s31, [#allocation6], 128, 128, 8
    $region9: #{tpu_custom_call.1} parent=1 // pred_fallthru
      _
    // Predicated region
    $region10: #{tpu_custom_call.1} parent=1 // pred_check
      _
    $region11: #{tpu_custom_call.1} parent=1 // pred_check_branch
      %38 = sbr.rel (0) target = $region13
    $region12: #{tpu_custom_call.1} parent=1 // pred_region
      _
    $region13: #{tpu_custom_call.1} parent=1 // pred_fallthru
      _
    // Predicated region
    $region14: #{tpu_custom_call.1} parent=1 // pred_check
      _
    $region15: #{tpu_custom_call.1} parent=1 // pred_check_branch
      %40 = sbr.rel (0) target = $region17
    $region16: #{tpu_custom_call.1} parent=1 // pred_region
      %42 = dma.done [#allocation3], 1536
    $region17: #{tpu_custom_call.1} parent=1 // pred_fallthru
      _
    // Predicated region
    $region18: #{tpu_custom_call.1} parent=1 // pred_check
      _
    $region19: #{tpu_custom_call.1} parent=1 // pred_check_branch
      %44 = sbr.rel (0) target = $region21
    $region20: #{tpu_custom_call.1} parent=1 // pred_region
      %46 = dma.done [#allocation6], 12288
    $region21: #{tpu_custom_call.1} parent=1 // pred_fallthru
      _
    %v47 = vld [vmem:[#allocation2] sm:$0xff]
    %v48 = vld [vmem:[#allocation2 + $0x8] sm:$0xff]
    %v49 = vld [vmem:[#allocation2 + $0x10] sm:$0xff]
    %v50 = vld [vmem:[#allocation2 + $0x18] sm:$0xff]
    %v51 = vld [vmem:[#allocation2 + $0x20] sm:$0xff]
    %v52 = vld [vmem:[#allocation2 + $0x28] sm:$0xff]
    %v53 = vld [vmem:[#allocation2 + $0x30] sm:$0xff]
    %v54 = vld [vmem:[#allocation2 + $0x38] sm:$0xff]
    %v55 = vld [vmem:[#allocation2 + $0x40] sm:$0xff]
    %v56 = vld [vmem:[#allocation2 + $0x48] sm:$0xff]
    %v57 = vld [vmem:[#allocation2 + $0x50] sm:$0xff]
    %v58 = vld [vmem:[#allocation2 + $0x58] sm:$0xff]
    %v59 = vld [vmem:[#allocation5] sm:$0xff]
    %v60 = vld [vmem:[#allocation5 + $0x8] sm:$0xff]
    %v61 = vld [vmem:[#allocation5 + $0x10] sm:$0xff]
    %v62 = vld [vmem:[#allocation5 + $0x18] sm:$0xff]
    %v63 = vld [vmem:[#allocation5 + $0x20] sm:$0xff]
    %v64 = vld [vmem:[#allocation5 + $0x28] sm:$0xff]
    %v65 = vld [vmem:[#allocation5 + $0x30] sm:$0xff]
    %v66 = vld [vmem:[#allocation5 + $0x38] sm:$0xff]
    %v67 = vld [vmem:[#allocation5 + $0x40] sm:$0xff]
    %v68 = vld [vmem:[#allocation5 + $0x48] sm:$0xff]
    %v69 = vld [vmem:[#allocation5 + $0x50] sm:$0xff]
    %v70 = vld [vmem:[#allocation5 + $0x58] sm:$0xff]
    %v71 = vld [vmem:[#allocation5 + $0x60] sm:$0xff]
    %v72 = vld [vmem:[#allocation5 + $0x68] sm:$0xff]
    %v73 = vld [vmem:[#allocation5 + $0x70] sm:$0xff]
    %v74 = vld [vmem:[#allocation5 + $0x78] sm:$0xff]
    %v75 = vld [vmem:[#allocation5 + $0x80] sm:$0xff]
    %v76 = vld [vmem:[#allocation5 + $0x88] sm:$0xff]
    %v77 = vld [vmem:[#allocation5 + $0x90] sm:$0xff]
    %v78 = vld [vmem:[#allocation5 + $0x98] sm:$0xff]
    %v79 = vld [vmem:[#allocation5 + $0xa0] sm:$0xff]
    %v80 = vld [vmem:[#allocation5 + $0xa8] sm:$0xff]
    %v81 = vld [vmem:[#allocation5 + $0xb0] sm:$0xff]
    %v82 = vld [vmem:[#allocation5 + $0xb8] sm:$0xff]
    %v83 = vld [vmem:[#allocation5 + $0xc0] sm:$0xff]
    %v84 = vld [vmem:[#allocation5 + $0xc8] sm:$0xff]
    %v85 = vld [vmem:[#allocation5 + $0xd0] sm:$0xff]
    %v86 = vld [vmem:[#allocation5 + $0xd8] sm:$0xff]
    %v87 = vld [vmem:[#allocation5 + $0xe0] sm:$0xff]
    %v88 = vld [vmem:[#allocation5 + $0xe8] sm:$0xff]
    %v89 = vld [vmem:[#allocation5 + $0xf0] sm:$0xff]
    %v90 = vld [vmem:[#allocation5 + $0xf8] sm:$0xff]
    %v91 = vld [vmem:[#allocation5 + $0x100] sm:$0xff]
    %v92 = vld [vmem:[#allocation5 + $0x108] sm:$0xff]
    %v93 = vld [vmem:[#allocation5 + $0x110] sm:$0xff]
    %v94 = vld [vmem:[#allocation5 + $0x118] sm:$0xff]
    %v95 = vld [vmem:[#allocation5 + $0x120] sm:$0xff]
    %v96 = vld [vmem:[#allocation5 + $0x128] sm:$0xff]
    %v97 = vld [vmem:[#allocation5 + $0x130] sm:$0xff]
    %v98 = vld [vmem:[#allocation5 + $0x138] sm:$0xff]
    %v99 = vld [vmem:[#allocation5 + $0x140] sm:$0xff]
    %v100 = vld [vmem:[#allocation5 + $0x148] sm:$0xff]
    %v101 = vld [vmem:[#allocation5 + $0x150] sm:$0xff]
    %v102 = vld [vmem:[#allocation5 + $0x158] sm:$0xff]
    %v103 = vld [vmem:[#allocation5 + $0x160] sm:$0xff]
    %v104 = vld [vmem:[#allocation5 + $0x168] sm:$0xff]
    %v105 = vld [vmem:[#allocation5 + $0x170] sm:$0xff]
    %v106 = vld [vmem:[#allocation5 + $0x178] sm:$0xff]
    %v107 = vld [vmem:[#allocation5 + $0x180] sm:$0xff]
    %v108 = vld [vmem:[#allocation5 + $0x188] sm:$0xff]
    %v109 = vld [vmem:[#allocation5 + $0x190] sm:$0xff]
    %v110 = vld [vmem:[#allocation5 + $0x198] sm:$0xff]
    %v111 = vld [vmem:[#allocation5 + $0x1a0] sm:$0xff]
    %v112 = vld [vmem:[#allocation5 + $0x1a8] sm:$0xff]
    %v113 = vld [vmem:[#allocation5 + $0x1b0] sm:$0xff]
    %v114 = vld [vmem:[#allocation5 + $0x1b8] sm:$0xff]
    %v115 = vld [vmem:[#allocation5 + $0x1c0] sm:$0xff]
    %v116 = vld [vmem:[#allocation5 + $0x1c8] sm:$0xff]
    %v117 = vld [vmem:[#allocation5 + $0x1d0] sm:$0xff]
    %v118 = vld [vmem:[#allocation5 + $0x1d8] sm:$0xff]
    %v119 = vld [vmem:[#allocation5 + $0x1e0] sm:$0xff]
    %v120 = vld [vmem:[#allocation5 + $0x1e8] sm:$0xff]
    %v121 = vld [vmem:[#allocation5 + $0x1f0] sm:$0xff]
    %v122 = vld [vmem:[#allocation5 + $0x1f8] sm:$0xff]
    %v123 = vld [vmem:[#allocation5 + $0x200] sm:$0xff]
    %v124 = vld [vmem:[#allocation5 + $0x208] sm:$0xff]
    %v125 = vld [vmem:[#allocation5 + $0x210] sm:$0xff]
    %v126 = vld [vmem:[#allocation5 + $0x218] sm:$0xff]
    %v127 = vld [vmem:[#allocation5 + $0x220] sm:$0xff]
    %v128 = vld [vmem:[#allocation5 + $0x228] sm:$0xff]
    %v129 = vld [vmem:[#allocation5 + $0x230] sm:$0xff]
    %v130 = vld [vmem:[#allocation5 + $0x238] sm:$0xff]
    %v131 = vld [vmem:[#allocation5 + $0x240] sm:$0xff]
    %v132 = vld [vmem:[#allocation5 + $0x248] sm:$0xff]
    %v133 = vld [vmem:[#allocation5 + $0x250] sm:$0xff]
    %v134 = vld [vmem:[#allocation5 + $0x258] sm:$0xff]
    %v135 = vld [vmem:[#allocation5 + $0x260] sm:$0xff]
    %v136 = vld [vmem:[#allocation5 + $0x268] sm:$0xff]
    %v137 = vld [vmem:[#allocation5 + $0x270] sm:$0xff]
    %v138 = vld [vmem:[#allocation5 + $0x278] sm:$0xff]
    %v139 = vld [vmem:[#allocation5 + $0x280] sm:$0xff]
    %v140 = vld [vmem:[#allocation5 + $0x288] sm:$0xff]
    %v141 = vld [vmem:[#allocation5 + $0x290] sm:$0xff]
    %v142 = vld [vmem:[#allocation5 + $0x298] sm:$0xff]
    %v143 = vld [vmem:[#allocation5 + $0x2a0] sm:$0xff]
    %v144 = vld [vmem:[#allocation5 + $0x2a8] sm:$0xff]
    %v145 = vld [vmem:[#allocation5 + $0x2b0] sm:$0xff]
    %v146 = vld [vmem:[#allocation5 + $0x2b8] sm:$0xff]
    %v147 = vld [vmem:[#allocation5 + $0x2c0] sm:$0xff]
    %v148 = vld [vmem:[#allocation5 + $0x2c8] sm:$0xff]
    %v149 = vld [vmem:[#allocation5 + $0x2d0] sm:$0xff]
    %v150 = vld [vmem:[#allocation5 + $0x2d8] sm:$0xff]
    %v151 = vld [vmem:[#allocation5 + $0x2e0] sm:$0xff]
    %v152 = vld [vmem:[#allocation5 + $0x2e8] sm:$0xff]
    %v153 = vld [vmem:[#allocation5 + $0x2f0] sm:$0xff]
    %v154 = vld [vmem:[#allocation5 + $0x2f8] sm:$0xff]
    %v155 = vld [vmem:[%s2] sm:$0x1]
    %v157 = vperm.slane %v155, 0
    %159 = vmatpush.msra.mxu0 %v74
    %160 = vmatpush.msra.mxu0 %v73
    %161 = vmatpush.msra.mxu0 %v72
    %162 = vmatpush.msra.mxu0 %v71
    %163 = vmatpush.msra.mxu0 %v70
    %164 = vmatpush.msra.mxu0 %v69
    %165 = vmatpush.msra.mxu0 %v68
    %166 = vmatpush.msra.mxu0 %v67
    %167 = vmatpush.msra.mxu0 %v66
    %168 = vmatpush.msra.mxu0 %v65
    %169 = vmatpush.msra.mxu0 %v64
    %170 = vmatpush.msra.mxu0 %v63
    %171 = vmatpush.msra.mxu0 %v62
    %172 = vmatpush.msra.mxu0 %v61
    %173 = vmatpush.msra.mxu0 %v60
    %174 = vmatpush.msra.mxu0 %v59
    %175 = vmatmul.f32.gmra.mxu0 %v47
    %v176 = vpop.f32.mrf.mxu0
    %v177 = vadd.f32 %v157, %v176
    %178 = vmatmul.f32.gmra.mxu0 %v53
    %v179 = vpop.f32.mrf.mxu0
    %v180 = vadd.f32 %v157, %v179
    %181 = vdwg.mxu0
    %182 = vmatpush.msra.mxu0 %v90
    %183 = vmatpush.msra.mxu0 %v89
    %184 = vmatpush.msra.mxu0 %v88
    %185 = vmatpush.msra.mxu0 %v87
    %186 = vmatpush.msra.mxu0 %v86
    %187 = vmatpush.msra.mxu0 %v85
    %188 = vmatpush.msra.mxu0 %v84
    %189 = vmatpush.msra.mxu0 %v83
    %190 = vmatpush.msra.mxu0 %v82
    %191 = vmatpush.msra.mxu0 %v81
    %192 = vmatpush.msra.mxu0 %v80
    %193 = vmatpush.msra.mxu0 %v79
    %194 = vmatpush.msra.mxu0 %v78
    %195 = vmatpush.msra.mxu0 %v77
    %196 = vmatpush.msra.mxu0 %v76
    %197 = vmatpush.msra.mxu0 %v75
    %198 = vmatmul.f32.gmra.mxu0 %v48
    %v199 = vpop.f32.mrf.mxu0
    %v200 = vadd.f32 %v177, %v199
    %201 = vmatmul.f32.gmra.mxu0 %v54
    %v202 = vpop.f32.mrf.mxu0
    %v203 = vadd.f32 %v180, %v202
    %204 = vdwg.mxu0
    %205 = vmatpush.msra.mxu0 %v106
    %206 = vmatpush.msra.mxu0 %v105
    %207 = vmatpush.msra.mxu0 %v104
    %208 = vmatpush.msra.mxu0 %v103
    %209 = vmatpush.msra.mxu0 %v102
    %210 = vmatpush.msra.mxu0 %v101
    %211 = vmatpush.msra.mxu0 %v100
    %212 = vmatpush.msra.mxu0 %v99
    %213 = vmatpush.msra.mxu0 %v98
    %214 = vmatpush.msra.mxu0 %v97
    %215 = vmatpush.msra.mxu0 %v96
    %216 = vmatpush.msra.mxu0 %v95
    %217 = vmatpush.msra.mxu0 %v94
    %218 = vmatpush.msra.mxu0 %v93
    %219 = vmatpush.msra.mxu0 %v92
    %220 = vmatpush.msra.mxu0 %v91
    %221 = vmatmul.f32.gmra.mxu0 %v49
    %v222 = vpop.f32.mrf.mxu0
    %v223 = vadd.f32 %v200, %v222
    %224 = vmatmul.f32.gmra.mxu0 %v55
    %v225 = vpop.f32.mrf.mxu0
    %v226 = vadd.f32 %v203, %v225
    %227 = vdwg.mxu0
    %228 = vmatpush.msra.mxu0 %v122
    %229 = vmatpush.msra.mxu0 %v121
    %230 = vmatpush.msra.mxu0 %v120
    %231 = vmatpush.msra.mxu0 %v119
    %232 = vmatpush.msra.mxu0 %v118
    %233 = vmatpush.msra.mxu0 %v117
    %234 = vmatpush.msra.mxu0 %v116
    %235 = vmatpush.msra.mxu0 %v115
    %236 = vmatpush.msra.mxu0 %v114
    %237 = vmatpush.msra.mxu0 %v113
    %238 = vmatpush.msra.mxu0 %v112
    %239 = vmatpush.msra.mxu0 %v111
    %240 = vmatpush.msra.mxu0 %v110
    %241 = vmatpush.msra.mxu0 %v109
    %242 = vmatpush.msra.mxu0 %v108
    %243 = vmatpush.msra.mxu0 %v107
    %244 = vmatmul.f32.gmra.mxu0 %v50
    %v245 = vpop.f32.mrf.mxu0
    %v246 = vadd.f32 %v223, %v245
    %247 = vmatmul.f32.gmra.mxu0 %v56
    %v248 = vpop.f32.mrf.mxu0
    %v249 = vadd.f32 %v226, %v248
    %250 = vdwg.mxu0
    %251 = vmatpush.msra.mxu0 %v138
    %252 = vmatpush.msra.mxu0 %v137
    %253 = vmatpush.msra.mxu0 %v136
    %254 = vmatpush.msra.mxu0 %v135
    %255 = vmatpush.msra.mxu0 %v134
    %256 = vmatpush.msra.mxu0 %v133
    %257 = vmatpush.msra.mxu0 %v132
    %258 = vmatpush.msra.mxu0 %v131
    %259 = vmatpush.msra.mxu0 %v130
    %260 = vmatpush.msra.mxu0 %v129
    %261 = vmatpush.msra.mxu0 %v128
    %262 = vmatpush.msra.mxu0 %v127
    %263 = vmatpush.msra.mxu0 %v126
    %264 = vmatpush.msra.mxu0 %v125
    %265 = vmatpush.msra.mxu0 %v124
    %266 = vmatpush.msra.mxu0 %v123
    %267 = vmatmul.f32.gmra.mxu0 %v51
    %v268 = vpop.f32.mrf.mxu0
    %v269 = vadd.f32 %v246, %v268
    %270 = vmatmul.f32.gmra.mxu0 %v57
    %v271 = vpop.f32.mrf.mxu0
    %v272 = vadd.f32 %v249, %v271
    %273 = vdwg.mxu0
    %274 = vmatpush.msra.mxu0 %v154
    %275 = vmatpush.msra.mxu0 %v153
    %276 = vmatpush.msra.mxu0 %v152
    %277 = vmatpush.msra.mxu0 %v151
    %278 = vmatpush.msra.mxu0 %v150
    %279 = vmatpush.msra.mxu0 %v149
    %280 = vmatpush.msra.mxu0 %v148
    %281 = vmatpush.msra.mxu0 %v147
    %282 = vmatpush.msra.mxu0 %v146
    %283 = vmatpush.msra.mxu0 %v145
    %284 = vmatpush.msra.mxu0 %v144
    %285 = vmatpush.msra.mxu0 %v143
    %286 = vmatpush.msra.mxu0 %v142
    %287 = vmatpush.msra.mxu0 %v141
    %288 = vmatpush.msra.mxu0 %v140
    %289 = vmatpush.msra.mxu0 %v139
    %290 = vmatmul.f32.gmra.mxu0 %v52
    %v291 = vpop.f32.mrf.mxu0
    %v292 = vadd.f32 %v269, %v291
    %293 = vmatmul.f32.gmra.mxu0 %v58
    %v294 = vpop.f32.mrf.mxu0
    %v295 = vadd.f32 %v272, %v294
    %296 = vdwg.mxu0
    %v297 = vmul.f32 %v292, %v292
    %v298 = vmul.f32 %v295, %v295
    %299 = vadd.xlane.f32.xlu0 %v297
    %v300 = vpop.xlane.xlu0 %299
    %301 = vadd.xlane.f32.xlu0 %v298
    %v302 = vpop.xlane.xlu0 %301
    %v303 = vrsqrt.pop %v300
    %v304 = vmul.f32 %v303, %v300
    %v305 = vmul.f32 %v304, %v303
    %v306 = vmul.f32 0.5, %v305
    %v307 = vsub.f32 1.5, %v306
    %v308 = vmul.f32 %v303, %v307
    %v309 = vmul.f32 %v300, %v308
    %vm310 = vcmp.eq.f32.partialorder %v300, inf
    %v311 = vsel %vm310, %v300, %v309
    %vm312 = vcmp.eq.f32.partialorder %v300, 0.0
    %v313 = vand.u32 %v300, 2147483648
    %v314 = vsel %vm312, %v313, %v311
    %v315 = vrsqrt.pop %v302
    %v316 = vmul.f32 %v315, %v302
    %v317 = vmul.f32 %v316, %v315
    %v318 = vmul.f32 0.5, %v317
    %v319 = vsub.f32 1.5, %v318
    %v320 = vmul.f32 %v315, %v319
    %v321 = vmul.f32 %v302, %v320
    %vm322 = vcmp.eq.f32.partialorder %v302, inf
    %v323 = vsel %vm322, %v302, %v321
    %vm324 = vcmp.eq.f32.partialorder %v302, 0.0
    %v325 = vand.u32 %v302, 2147483648
    %v326 = vsel %vm324, %v325, %v323
    %v327 = vadd.f32 %v314, 1e-08
    %v328 = vadd.f32 %v326, 1e-08
    %v329 = vrcp.pop %v327
    %v330 = vrcp.pop %v328
    %v331 = vmul.f32 %v292, %v329
    %v332 = vmul.f32 %v295, %v330
    %333 = vst [vmem:[#allocation7] sm:$0xff] %v331
    %334 = vst [vmem:[#allocation7 + $0x8] sm:$0xff] %v332
    // Predicated region
    $region22: #{tpu_custom_call.1} parent=1 // pred_check
      _
    $region23: #{tpu_custom_call.1} parent=1 // pred_check_branch
      %336 = sbr.rel (0) target = $region25
    $region24: #{tpu_custom_call.1} parent=1 // pred_region
      %338 = vsyncadd [#allocation4], 0
      %s339 = sshll.u32 [#allocation7], 4
      %s340 = int_to_ptr.vmem [resolvable:$true] %s339
      %s341 = sshll.u32 %s3, 4
      %s342 = int_to_ptr.hbm [resolvable:$true] %s341
      %347 = dma.vmem_to_hbm [thread:$0]  %s340, 256, %s342, [#allocation4], 128, 128, 8
    $region25: #{tpu_custom_call.1} parent=1 // pred_fallthru
      _
    // Predicated region
    $region26: #{tpu_custom_call.1} parent=1 // pred_check
      _
    $region27: #{tpu_custom_call.1} parent=1 // pred_check_branch
      %349 = sbr.rel (0) target = $region29
    $region28: #{tpu_custom_call.1} parent=1 // pred_region
      %351 = dma.done [#allocation4], 256
    $region29: #{tpu_custom_call.1} parent=1 // pred_fallthru
      _
    %352 = vsyncpa [#allocation3], 1
    %353 = vsyncpa [#allocation6], 1
    %354 = vsyncpa [#allocation4], 1

</llo_original>
